<compile_context>
chip_gen: v6e
topology: v6e:2x2x1
jax: 0.10.0
libtpu: 0.0.40
codegen_flags: <defaults>
</compile_context>

<pallas_src>
import jax
import jax.numpy as jnp
from jax.experimental import pallas as pl
from jax.experimental.pallas import tpu as pltpu


# ---------------------------------------------------------------------------
# Helpers
# ---------------------------------------------------------------------------
def _round_up(x, m):
    return ((x + m - 1) // m) * m


def _vmem_limit_bytes():
    """Generation-aware VMEM limit: ~75% of physical, safe 32 MiB fallback."""
    try:
        cap = int(pltpu.get_tpu_info().vmem_capacity_bytes)
        return max(32 << 20, (cap * 3) // 4)
    except Exception:
        return 32 << 20


def _pick_tile_m(batch, max_tile_m):
    """Largest row tile (multiple of 8, <= max_tile_m) with minimal padding."""
    m8 = _round_up(batch, 8)
    if m8 <= max_tile_m:
        return m8, m8
    tile = 8
    start = max_tile_m - (max_tile_m % 8)
    for t in range(start, 7, -8):
        if m8 % t == 0:          # exact divisor -> zero padded rows
            tile = t
            break
    return tile, _round_up(m8, tile)


def _pick_tk(d0_p, max_tk=512):
    """Layer-1 K chunk: multiple of 128 dividing d0_p, >= 2 chunks if possible."""
    for cand in (512, 384, 256, 128):
        if cand <= max_tk and d0_p % cand == 0 and d0_p // cand >= 2:
            return cand
    return d0_p


# ---------------------------------------------------------------------------
# Fused MLP kernel
# refs = (x, w1, b1, w2, b2, ..., wL, bL, out, acc_scratch)
#   x    : [tile_m, tk]          f32   (K-chunked view of the input rows)
#   w1   : [tk, d1_p]            bf16  (streamed across the K grid axis)
#   wl>1 : [d(l-1)_p, dl_p]      bf16  (resident, single-buffered)
#   bl   : [1, dl_p]             f32
#   out  : [tile_m, dL_p]        f32
#   acc  : [tile_m, d1_p]        f32   (layer-1 accumulator across K chunks)
# ---------------------------------------------------------------------------
def _make_mlp_kernel(num_layers, k_steps):
    def kernel(*refs):
        x_ref = refs[0]
        o_ref = refs[-2]
        acc_ref = refs[-1]
        k = pl.program_id(1)

        @pl.when(k == 0)
        def _init():
            acc_ref[...] = jnp.zeros_like(acc_ref)

        # Layer 1, K-chunked: bf16 MXU inputs, f32 accumulation.
        w1_ref = refs[1]
        acc_ref[...] += jnp.dot(
            x_ref[...].astype(jnp.bfloat16), w1_ref[...],
            preferred_element_type=jnp.float32)

        @pl.when(k == k_steps - 1)
        def _finish():
            b1_ref = refs[2]
            h = jnp.maximum(acc_ref[...] + b1_ref[...], 0.0)   # f32 epilogue
            for l in range(1, num_layers):
                w_ref = refs[1 + 2 * l]
                b_ref = refs[2 + 2 * l]
                h = jnp.dot(h.astype(jnp.bfloat16), w_ref[...],
                            preferred_element_type=jnp.float32)
                h = jnp.maximum(h + b_ref[...], 0.0)
            o_ref[...] = h
    return kernel


# ---------------------------------------------------------------------------
# Parameters (same init as the PyTorch module: W ~ N(0, 0.1), b = 0.1)
# ---------------------------------------------------------------------------
def init_params(key, input_dim, hidden_dims):
    dims = [input_dim] + list(hidden_dims)
    keys = jax.random.split(key, len(dims) - 1)
    params = []
    for i in range(len(dims) - 1):
        d_in, d_out = dims[i], dims[i + 1]
        w = 0.1 * jax.random.normal(keys[i], (d_out, d_in), jnp.float32)  # torch [out,in]
        b = jnp.full((d_out,), 0.1, jnp.float32)
        params.append((w, b))
    return params


def pack_params(params):
    """One-time prep: transpose to [in,out], pad dims to 128, weights -> bf16."""
    packed = []
    for w, b in params:
        d_out, d_in = w.shape
        d_in_p = _round_up(d_in, 128)
        d_out_p = _round_up(d_out, 128)
        wt = jnp.zeros((d_in_p, d_out_p), jnp.float32).at[:d_in, :d_out].set(w.T)
        wt = wt.astype(jnp.bfloat16)                       # bf16 MXU inputs
        bp = jnp.zeros((1, d_out_p), jnp.float32).at[0, :d_out].set(b)
        packed.append((wt, bp))
    return packed


# ---------------------------------------------------------------------------
# Forward pass (single pallas_call, grid = (row tiles, layer-1 K chunks))
# ---------------------------------------------------------------------------
def mlp_forward(packed_params, x, out_dim, *, max_tile_m=512):
    B = x.shape[0]
    x2 = x.reshape(B, -1).astype(jnp.float32)              # == x.view(-1, input_dim)
    d0 = x2.shape[1]
    num_layers = len(packed_params)
    dims_p = [packed_params[0][0].shape[0]] + [w.shape[1] for w, _ in packed_params]
    d0_p, d1_p, d_last_p = dims_p[0], dims_p[1], dims_p[-1]

    # --- tiling ---------------------------------------------------------
    tile_m, m_p = _pick_tile_m(B, max_tile_m)
    tk = _pick_tk(d0_p)
    k_steps = d0_p // tk

    # --- VMEM residency budget ------------------------------------------
    vmem_limit = _vmem_limit_bytes()
    budget = vmem_limit - (4 << 20)                         # compiler headroom

    def _estimate(tm):
        w1_bytes = 2 * tk * d1_p * 2                        # streamed chunk, x2 bufs, bf16
        rest_w = sum(dims_p[l] * dims_p[l + 1] * 2 for l in range(1, num_layers))
        biases = sum(dims_p[l + 1] * 4 for l in range(num_layers))
        x_bytes = 2 * tm * tk * 4
        out_bytes = 2 * tm * d_last_p * 4
        acc_bytes = tm * d1_p * 4
        act_bytes = 2 * tm * max(dims_p[1:]) * 4            # inter-layer h temporaries
        return w1_bytes + rest_w + biases + x_bytes + out_bytes + acc_bytes + act_bytes

    while _estimate(tile_m) > budget and tile_m > 8:
        tile_m = max(8, _round_up(tile_m // 2, 8))
    # TODO(synk): if the resident weight stack alone exceeds the VMEM budget,
    # fall back to per-layer K/N streaming (pltpu.emit_pipeline) instead.
    m_p = _round_up(_round_up(B, 8), tile_m)

    # --- input prep: skip padding copies when not needed -----------------
    if m_p == B and d0_p == d0:
        xp = x2
    else:
        xp = jnp.zeros((m_p, d0_p), jnp.float32).at[:B, :d0].set(x2)

    # --- specs ------------------------------------------------------------
    in_specs = [pl.BlockSpec((tile_m, tk), lambda i, k: (i, k))]
    flat = [xp]
    for l, (w, b) in enumerate(packed_params):
        if l == 0:
            # streamed over the K grid axis -> keep default double-buffering
            in_specs.append(pl.BlockSpec((tk, d1_p), lambda i, k: (k, 0)))
        else:
            # fully resident, fetched once -> single buffer halves its VMEM cost
            in_specs.append(pl.BlockSpec(w.shape, lambda i, k: (0, 0),
                                         pipeline_mode=pl.Buffered(1)))
        in_specs.append(pl.BlockSpec(b.shape, lambda i, k: (0, 0),
                                     pipeline_mode=pl.Buffered(1)))
        flat += [w, b]

    out = pl.pallas_call(
        _make_mlp_kernel(num_layers, k_steps),
        out_shape=jax.ShapeDtypeStruct((m_p, d_last_p), jnp.float32),
        grid=(m_p // tile_m, k_steps),
        in_specs=in_specs,
        out_specs=pl.BlockSpec((tile_m, d_last_p), lambda i, k: (i, 0)),
        scratch_shapes=[pltpu.VMEM((tile_m, d1_p), jnp.float32)],
        compiler_params=pltpu.CompilerParams(
            dimension_semantics=("parallel", "arbitrary"),
            vmem_limit_bytes=vmem_limit,
        ),
    )(*flat)

    if m_p == B and d_last_p == out_dim:
        return out
    return out[:B, :out_dim]


# ---------------------------------------------------------------------------
# Pure-JAX reference (mirrors the PyTorch forward exactly, f32)
# ---------------------------------------------------------------------------
def mlp_ref(params, x):
    h = x.reshape(x.shape[0], -1)
    for w, b in params:
        h = jnp.maximum(h @ w.T + b, 0.0)
    return h


if __name__ == "__main__":
    key = jax.random.PRNGKey(0)
    k_param, k_x = jax.random.split(key)

    # x: [2, 4, 16, 16] -> input_dim = 4*16*16 = 1024, hidden_dims = [256, 128]
    input_dim = 4 * 16 * 16
    hidden_dims = [256, 128]

    params = init_params(k_param, input_dim, hidden_dims)
    packed = pack_params(params)

    x = jax.random.normal(k_x, (2, 4, 16, 16), jnp.float32)

    out = mlp_forward(packed, x, out_dim=hidden_dims[-1])
    jax.block_until_ready(out)

    assert out.shape == (2, hidden_dims[-1])
    assert bool(jnp.all(jnp.isfinite(out)))

    # bf16 MXU inputs with f32 accumulation vs. pure-f32 reference.
    ref = mlp_ref(params, x)
    assert bool(jnp.allclose(out, ref, rtol=2e-2, atol=8e-2))

    print("KERNEL_OK")
</pallas_src>

<mosaic_0001>
module attributes {stable_mosaic.version = 11 : i64} {
  func.func @kernel(%arg0: i32, %arg1: i32, %arg2: memref<8x512xf32, #tpu.memory_space<vmem>>, %arg3: memref<512x256xbf16, #tpu.memory_space<vmem>>, %arg4: memref<1x256xf32, #tpu.memory_space<vmem>>, %arg5: memref<256x128xbf16, #tpu.memory_space<vmem>>, %arg6: memref<1x128xf32, #tpu.memory_space<vmem>>, %arg7: memref<8x128xf32, #tpu.memory_space<vmem>>, %arg8: memref<8x256xf32, #tpu.memory_space<vmem>>) attributes {dimension_semantics = [#tpu.dimension_semantics<parallel>, #tpu.dimension_semantics<arbitrary>], iteration_bounds = array<i64: 1, 2>, scalar_prefetch = 0 : i64, scratch_operands = 1 : i64, tpu.core_type = #tpu.core_type<tc>, window_params = [{transform_indices = @transform_0, window_bounds = array<i64: 8, 512>}, {transform_indices = @transform_1, window_bounds = array<i64: 512, 256>}, {pipeline_mode = #tpu.pipeline_mode<synchronous>, transform_indices = @transform_2, window_bounds = array<i64: 1, 256>}, {pipeline_mode = #tpu.pipeline_mode<synchronous>, transform_indices = @transform_3, window_bounds = array<i64: 256, 128>}, {pipeline_mode = #tpu.pipeline_mode<synchronous>, transform_indices = @transform_4, window_bounds = array<i64: 1, 128>}, {transform_indices = @transform_5, window_bounds = array<i64: 8, 128>}]} {
    %c0_i32 = arith.constant 0 : i32
    %0 = arith.cmpi eq, %arg1, %c0_i32 : i32
    %1 = arith.extui %0 : i1 to i32
    %c0_i32_0 = arith.constant 0 : i32
    %2 = arith.cmpi ne, %1, %c0_i32_0 : i32
    scf.if %2 {
      %cst_9 = arith.constant 0.000000e+00 : f32
      %13 = vector.broadcast %cst_9 : f32 to vector<8x256xf32>
      %c0_10 = arith.constant 0 : index
      %c0_11 = arith.constant 0 : index
      %14 = vector.load %arg8[%c0_10, %c0_11] : memref<8x256xf32, #tpu.memory_space<vmem>>, vector<8x256xf32>
      tpu.vector_store %arg8[%c0_10, %c0_11], %13 {strides = array<i32>} : memref<8x256xf32, #tpu.memory_space<vmem>>, vector<8x256xf32>,
    } else {
    }
    %c0 = arith.constant 0 : index
    %c0_1 = arith.constant 0 : index
    %3 = vector.load %arg8[%c0, %c0_1] : memref<8x256xf32, #tpu.memory_space<vmem>>, vector<8x256xf32>
    %c0_2 = arith.constant 0 : index
    %c0_3 = arith.constant 0 : index
    %4 = vector.load %arg2[%c0_2, %c0_3] : memref<8x512xf32, #tpu.memory_space<vmem>>, vector<8x512xf32>
    %5 = arith.truncf %4 : vector<8x512xf32> to vector<8x512xbf16>
    %c0_4 = arith.constant 0 : index
    %c0_5 = arith.constant 0 : index
    %6 = vector.load %arg3[%c0_4, %c0_5] : memref<512x256xbf16, #tpu.memory_space<vmem>>, vector<512x256xbf16>
    %cst = arith.constant dense<0.000000e+00> : vector<8x256xf32>
    %7 = tpu.matmul %5, %6, %cst {dimension_numbers = #tpu.dot_dimension_numbers<[1], [0], [0], [1], [0, 0, 1, 1], [], []>} : vector<8x512xbf16>, vector<512x256xbf16>, vector<8x256xf32> -> vector<8x256xf32>
    %8 = arith.addf %3, %7 : vector<8x256xf32>
    %c0_6 = arith.constant 0 : index
    %c0_7 = arith.constant 0 : index
    %9 = vector.load %arg8[%c0_6, %c0_7] : memref<8x256xf32, #tpu.memory_space<vmem>>, vector<8x256xf32>
    tpu.vector_store %arg8[%c0_6, %c0_7], %8 {strides = array<i32>} : memref<8x256xf32, #tpu.memory_space<vmem>>, vector<8x256xf32>,
    %c1_i32 = arith.constant 1 : i32
    %10 = arith.cmpi eq, %arg1, %c1_i32 : i32
    %11 = arith.extui %10 : i1 to i32
    %c0_i32_8 = arith.constant 0 : i32
    %12 = arith.cmpi ne, %11, %c0_i32_8 : i32
    scf.if %12 {
      %c0_9 = arith.constant 0 : index
      %c0_10 = arith.constant 0 : index
      %13 = vector.load %arg8[%c0_9, %c0_10] : memref<8x256xf32, #tpu.memory_space<vmem>>, vector<8x256xf32>
      %c0_11 = arith.constant 0 : index
      %c0_12 = arith.constant 0 : index
      %14 = vector.load %arg4[%c0_11, %c0_12] : memref<1x256xf32, #tpu.memory_space<vmem>>, vector<1x256xf32>
      %15 = vector.broadcast %14 : vector<1x256xf32> to vector<8x256xf32>
      %16 = arith.addf %13, %15 : vector<8x256xf32>
      %cst_13 = arith.constant 0.000000e+00 : f32
      %17 = vector.broadcast %cst_13 : f32 to vector<8x256xf32>
      %18 = arith.maximumf %16, %17 : vector<8x256xf32>
      %19 = arith.truncf %18 : vector<8x256xf32> to vector<8x256xbf16>
      %c0_14 = arith.constant 0 : index
      %c0_15 = arith.constant 0 : index
      %20 = vector.load %arg5[%c0_14, %c0_15] : memref<256x128xbf16, #tpu.memory_space<vmem>>, vector<256x128xbf16>
      %cst_16 = arith.constant dense<0.000000e+00> : vector<8x128xf32>
      %21 = tpu.matmul %19, %20, %cst_16 {dimension_numbers = #tpu.dot_dimension_numbers<[1], [0], [0], [1], [0, 0, 1, 1], [], []>} : vector<8x256xbf16>, vector<256x128xbf16>, vector<8x128xf32> -> vector<8x128xf32>
      %c0_17 = arith.constant 0 : index
      %c0_18 = arith.constant 0 : index
      %22 = vector.load %arg6[%c0_17, %c0_18] : memref<1x128xf32, #tpu.memory_space<vmem>>, vector<1x128xf32>
      %23 = vector.broadcast %22 : vector<1x128xf32> to vector<8x128xf32>
      %24 = arith.addf %21, %23 : vector<8x128xf32>
      %cst_19 = arith.constant 0.000000e+00 : f32
      %25 = vector.broadcast %cst_19 : f32 to vector<8x128xf32>
      %26 = arith.maximumf %24, %25 : vector<8x128xf32>
      %c0_20 = arith.constant 0 : index
      %c0_21 = arith.constant 0 : index
      %27 = vector.load %arg7[%c0_20, %c0_21] : memref<8x128xf32, #tpu.memory_space<vmem>>, vector<8x128xf32>
      tpu.vector_store %arg7[%c0_20, %c0_21], %26 {strides = array<i32>} : memref<8x128xf32, #tpu.memory_space<vmem>>, vector<8x128xf32>,
    } else {
    }
    return
  }
  func.func @transform_0(%arg0: i32, %arg1: i32) -> (i32, i32) {
    %c0_i32 = arith.constant 0 : i32
    return %arg0, %arg1 : i32, i32
  }
  func.func @transform_1(%arg0: i32, %arg1: i32) -> (i32, i32) {
    %c0_i32 = arith.constant 0 : i32
    %c0_i32_0 = arith.constant 0 : i32
    return %arg1, %c0_i32 : i32, i32
  }
  func.func @transform_2(%arg0: i32, %arg1: i32) -> (i32, i32) {
    %c0_i32 = arith.constant 0 : i32
    %c0_i32_0 = arith.constant 0 : i32
    %c0_i32_1 = arith.constant 0 : i32
    return %c0_i32, %c0_i32_0 : i32, i32
  }
  func.func @transform_3(%arg0: i32, %arg1: i32) -> (i32, i32) {
    %c0_i32 = arith.constant 0 : i32
    %c0_i32_0 = arith.constant 0 : i32
    %c0_i32_1 = arith.constant 0 : i32
    return %c0_i32, %c0_i32_0 : i32, i32
  }
  func.func @transform_4(%arg0: i32, %arg1: i32) -> (i32, i32) {
    %c0_i32 = arith.constant 0 : i32
    %c0_i32_0 = arith.constant 0 : i32
    %c0_i32_1 = arith.constant 0 : i32
    return %c0_i32, %c0_i32_0 : i32, i32
  }
  func.func @transform_5(%arg0: i32, %arg1: i32) -> (i32, i32) {
    %c0_i32 = arith.constant 0 : i32
    %c0_i32_0 = arith.constant 0 : i32
    return %arg0, %c0_i32 : i32, i32
  }
}

</mosaic_0001>

<llo_original>
// kernel: tpu_custom_call.1
$region0: #{tpu_custom_call.1}
  #allocation0 [shape = 'u32[]', space=smem, size = 0x4, offset = 0x4, fixed_abs, tag = 'smem constant byte address 0x4 - core index']
  #allocation1 [shape = 'u32[144,128]{1,0:T(1,128)}', space=vmem, size = 0x12000, scoped, tag = 'internal scratch']
  #allocation2 [shape = 'f32[8,256]{1,0:T(8,128)}', space=vmem, size = 0x2000, scoped, tag = 'scratch operand']
  %s0 = inlined_call_operand.hbm [shape: f32[8,1024], index: 0, kind: input, shape index: {}]
  %s1 = inlined_call_operand.hbm [shape: bf16[1024,256], index: 1, kind: input, shape index: {}]
  %s2 = inlined_call_operand.vmem [shape: f32[1,256], index: 2, kind: input, shape index: {}]
  %s3 = inlined_call_operand.hbm [shape: bf16[256,128], index: 3, kind: input, shape index: {}]
  %s4 = inlined_call_operand.vmem [shape: f32[1,128], index: 4, kind: input, shape index: {}]
  %s5 = inlined_call_operand.hbm [shape: f32[8,128], index: 5, kind: output, shape index: {}]
  %s6 = sld [smem:[#allocation0]]
  $region73: #{tpu_custom_call.1} parent=0
    _
  %s8 = ssub.s32 1, %s6
  %s9 = scalar_select 0, %s8, %s6
  $region1: #{tpu_custom_call.1} parent=0
    #allocation3 [shape = 'u8[32768]{0}', space=vmem, size = 0x8000, scoped, tag = 'input window, operand 0']
    #allocation4 [shape = 's32[2]{0}', space=sflag, size = 0x8, scoped, tag = 'scoped memory for tpu_custom_call.1']
    #allocation5 [shape = 's32[2]{0}', space=sflag, size = 0x8, scoped, tag = 'scoped memory for tpu_custom_call.1']
    #allocation6 [shape = 'u8[524288]{0}', space=vmem, size = 0x80000, scoped, tag = 'input window, operand 1']
    #allocation7 [shape = 's32[2]{0}', space=sflag, size = 0x8, scoped, tag = 'scoped memory for tpu_custom_call.1']
    #allocation8 [shape = 'u8[65536]{0}', space=vmem, size = 0x10000, scoped, tag = 'input window, operand 3, single buffered']
    #allocation9 [shape = 'u8[4096]{0}', space=vmem, size = 0x1000, scoped, tag = 'output window, operand 0, single buffered']
    %10 = vsyncpa [#allocation4], 0
    %s11 = scalar_lea.sflag [#allocation4], 1
    %12 = vsyncpa %s11, 0
    %13 = vsyncpa [#allocation7], 0
    %s14 = scalar_lea.sflag [#allocation7], 1
    %15 = vsyncpa %s14, 0
    %16 = vsyncpa [#allocation5], 0
    loop: start=0, step=1, limit=4
    $region2: #{tpu_custom_call.1} parent=1 // loop_pre_header
      _
    $region3: #{tpu_custom_call.1} parent=1 // loop_header
      %s18 = sphi 0, %s22
      %p19 = scmp.ge.s32.totalorder %s18, 4
      %s25 = sphi 0, %s37
      %s26 = sphi 0, %s33
      %s27 = sphi 0, %s25
      %s28 = sphi 0, %s26
      %s29 = sphi 0, %s27
      %s30 = sphi 0, %s28
      %s42 = sphi 0, %s44
      %s45 = sphi 0, %s42
      %s46 = sphi 0, %s45
      %s62 = sphi 0, %s46
      %s68 = sphi 0, %s70
      %s71 = sphi 0, %s68
      %s72 = sphi 0, %s71
      %s88 = sphi 0, %s72
      %s92 = sphi 0, %s92
      %s94 = sphi 0, %s92
      %s95 = sphi 0, %s94
      %s109 = sphi 0, %s95
      %s113 = sphi 0, %s113
      %s115 = sphi 0, %s113
      %s116 = sphi 0, %s115
      %s130 = sphi 0, %s116
      %s134 = sphi 0, %s134
      %s136 = sphi 0, %s134
      %s137 = sphi 0, %s136
      %s151 = sphi 0, %s137
      %s157 = sphi 0, %s159
      %s160 = sphi 0, %s157
      %s161 = sphi 0, %s160
      %s177 = sphi 0, %s161
    $region4: #{tpu_custom_call.1} parent=1 // loop_header_branch
      %21 = sbr.rel (%p19) target = $region8
    $region5: #{tpu_custom_call.1} parent=1 // loop_body
      %s23 = ssub.s32 %s18, 1
      %s24 = ssub.s32 %s18, 2
      %s31 = sadd.s32 1, %s26
      %p32 = scmp.ge.s32.totalorder %s31, 2
      %s33 = scalar_select %p32, 0, %s31
      %s34 = sadd.s32 1, %s25
      %s35 = scalar_select %p32, %s34, %s25
      %p36 = scmp.ge.s32.totalorder %s35, 1
      %s37 = scalar_select %p36, 0, %s35
      %s38 = ssub.s32 %s25, %s37
      %s39 = ssub.s32 %s26, %s33
      %s40 = sor.u32 %s38, %s39
      %p41 = scmp.eq.s32.totalorder %s40, 0
      %s43 = sadd.s32 %s42, 1
      %s44 = scalar_select %p41, %s42, %s43
      %p47 = pneg %p41
      %p48 = scmp.eq.s32.totalorder %s18, 1
      %p49 = por %p47, %p48
      %p50 = scmp.ne.s32.totalorder %s42, %s45
      %p51 = scmp.eq.s32.totalorder %s18, 0
      %p52 = por %p50, %p51
      %p53 = scmp.ne.s32.totalorder %s42, %s45
      %p54 = scmp.eq.s32.totalorder %s23, 1
      %p55 = por %p53, %p54
      %p56 = scmp.ne.s32.totalorder %s45, %s46
      %p57 = scmp.eq.s32.totalorder %s23, 0
      %p58 = por %p56, %p57
      %p59 = scmp.ne.s32.totalorder %s45, %s46
      %p60 = scmp.eq.s32.totalorder %s24, 1
      %p61 = por %p59, %p60
      %p63 = scmp.ne.s32.totalorder %s46, %s62
      %p64 = scmp.eq.s32.totalorder %s24, 0
      %p65 = por %p63, %p64
      %s66 = ssub.s32 %s26, %s33
      %p67 = scmp.eq.s32.totalorder %s66, 0
      %s69 = sadd.s32 %s68, 1
      %s70 = scalar_select %p67, %s68, %s69
      %p73 = pneg %p67
      %p74 = scmp.eq.s32.totalorder %s18, 1
      %p75 = por %p73, %p74
      %p76 = scmp.ne.s32.totalorder %s68, %s71
      %p77 = scmp.eq.s32.totalorder %s18, 0
      %p78 = por %p76, %p77
      %p79 = scmp.ne.s32.totalorder %s68, %s71
      %p80 = scmp.eq.s32.totalorder %s23, 1
      %p81 = por %p79, %p80
      %p82 = scmp.ne.s32.totalorder %s71, %s72
      %p83 = scmp.eq.s32.totalorder %s23, 0
      %p84 = por %p82, %p83
      %p85 = scmp.ne.s32.totalorder %s71, %s72
      %p86 = scmp.eq.s32.totalorder %s24, 1
      %p87 = por %p85, %p86
      %p89 = scmp.ne.s32.totalorder %s72, %s88
      %p90 = scmp.eq.s32.totalorder %s24, 0
      %p91 = por %p89, %p90
      %s93 = sadd.s32 %s92, 1
      %p96 = scmp.eq.s32.totalorder %s18, 1
      %p97 = scmp.ne.s32.totalorder %s92, %s94
      %p98 = scmp.eq.s32.totalorder %s18, 0
      %p99 = por %p97, %p98
      %p100 = scmp.ne.s32.totalorder %s92, %s94
      %p101 = scmp.eq.s32.totalorder %s23, 1
      %p102 = por %p100, %p101
      %p103 = scmp.ne.s32.totalorder %s94, %s95
      %p104 = scmp.eq.s32.totalorder %s23, 0
      %p105 = por %p103, %p104
      %p106 = scmp.ne.s32.totalorder %s94, %s95
      %p107 = scmp.eq.s32.totalorder %s24, 1
      %p108 = por %p106, %p107
      %p110 = scmp.ne.s32.totalorder %s95, %s109
      %p111 = scmp.eq.s32.totalorder %s24, 0
      %p112 = por %p110, %p111
      %s114 = sadd.s32 %s113, 1
      %p117 = scmp.eq.s32.totalorder %s18, 1
      %p118 = scmp.ne.s32.totalorder %s113, %s115
      %p119 = scmp.eq.s32.totalorder %s18, 0
      %p120 = por %p118, %p119
      %p121 = scmp.ne.s32.totalorder %s113, %s115
      %p122 = scmp.eq.s32.totalorder %s23, 1
      %p123 = por %p121, %p122
      %p124 = scmp.ne.s32.totalorder %s115, %s116
      %p125 = scmp.eq.s32.totalorder %s23, 0
      %p126 = por %p124, %p125
      %p127 = scmp.ne.s32.totalorder %s115, %s116
      %p128 = scmp.eq.s32.totalorder %s24, 1
      %p129 = por %p127, %p128
      %p131 = scmp.ne.s32.totalorder %s116, %s130
      %p132 = scmp.eq.s32.totalorder %s24, 0
      %p133 = por %p131, %p132
      %s135 = sadd.s32 %s134, 1
      %p138 = scmp.eq.s32.totalorder %s18, 1
      %p139 = scmp.ne.s32.totalorder %s134, %s136
      %p140 = scmp.eq.s32.totalorder %s18, 0
      %p141 = por %p139, %p140
      %p142 = scmp.ne.s32.totalorder %s134, %s136
      %p143 = scmp.eq.s32.totalorder %s23, 1
      %p144 = por %p142, %p143
      %p145 = scmp.ne.s32.totalorder %s136, %s137
      %p146 = scmp.eq.s32.totalorder %s23, 0
      %p147 = por %p145, %p146
      %p148 = scmp.ne.s32.totalorder %s136, %s137
      %p149 = scmp.eq.s32.totalorder %s24, 1
      %p150 = por %p148, %p149
      %p152 = scmp.ne.s32.totalorder %s137, %s151
      %p153 = scmp.eq.s32.totalorder %s24, 0
      %p154 = por %p152, %p153
      %s155 = ssub.s32 %s25, %s37
      %p156 = scmp.eq.s32.totalorder %s155, 0
      %s158 = sadd.s32 %s157, 1
      %s159 = scalar_select %p156, %s157, %s158
      %p162 = pneg %p156
      %p163 = scmp.eq.s32.totalorder %s18, 1
      %p164 = por %p162, %p163
      %p165 = scmp.ne.s32.totalorder %s157, %s160
      %p166 = scmp.eq.s32.totalorder %s18, 0
      %p167 = por %p165, %p166
      %p168 = scmp.ne.s32.totalorder %s157, %s160
      %p169 = scmp.eq.s32.totalorder %s23, 1
      %p170 = por %p168, %p169
      %p171 = scmp.ne.s32.totalorder %s160, %s161
      %p172 = scmp.eq.s32.totalorder %s23, 0
      %p173 = por %p171, %p172
      %p174 = scmp.ne.s32.totalorder %s160, %s161
      %p175 = scmp.eq.s32.totalorder %s24, 1
      %p176 = por %p174, %p175
      %p178 = scmp.ne.s32.totalorder %s161, %s177
      %p179 = scmp.eq.s32.totalorder %s24, 0
      %p180 = por %p178, %p179
      %p181 = scmp.le.s32.totalorder 1, %s18
      %p182 = scmp.lt.s32.totalorder %s18, 3
      %p183 = pnand %p181, %p182
      %p184 = pneg %p183
      // Predicated region
      $region9: #{tpu_custom_call.1} parent=5 // pred_check
        _
      $region10: #{tpu_custom_call.1} parent=5 // pred_check_branch
        %186 = sbr.rel (%p183) target = $region12
      $region11: #{tpu_custom_call.1} parent=5 // pred_region
        %s187 = ssub.s32 %s18, 1
        // Predicated region
        $region13: #{tpu_custom_call.1} parent=11 // pred_check
          %p188 = pneg %p105
        $region14: #{tpu_custom_call.1} parent=11 // pred_check_branch
          %190 = sbr.rel (%p188) target = $region16
        $region15: #{tpu_custom_call.1} parent=11 // pred_region
          _
        $region16: #{tpu_custom_call.1} parent=11 // pred_fallthru
          _
        // Predicated region
        $region17: #{tpu_custom_call.1} parent=11 // pred_check
          %p191 = pneg %p126
        $region18: #{tpu_custom_call.1} parent=11 // pred_check_branch
          %193 = sbr.rel (%p191) target = $region20
        $region19: #{tpu_custom_call.1} parent=11 // pred_region
          %s195 = ssub.s32 2048, 2048
          %196 = vsyncadd [#allocation7], %s195
          %s197 = sshll.u32 [#allocation8], 4
          %s198 = int_to_ptr.vmem [resolvable:$true] %s197
          %203 = dma.hbm_to_vmem [thread:$0]  %s3, 2048, %s198, [#allocation7], 64, 64, 4
        $region20: #{tpu_custom_call.1} parent=11 // pred_fallthru
          _
        // Predicated region
        $region21: #{tpu_custom_call.1} parent=11 // pred_check
          %p204 = pneg %p147
        $region22: #{tpu_custom_call.1} parent=11 // pred_check_branch
          %206 = sbr.rel (%p204) target = $region24
        $region23: #{tpu_custom_call.1} parent=11 // pred_region
          _
        $region24: #{tpu_custom_call.1} parent=11 // pred_fallthru
          _
      $region12: #{tpu_custom_call.1} parent=5 // pred_fallthru
        _
      %p207 = scmp.lt.s32.totalorder %s18, 2
      // Predicated region
      $region25: #{tpu_custom_call.1} parent=5 // pred_check
        %p208 = pneg %p207
      $region26: #{tpu_custom_call.1} parent=5 // pred_check_branch
        %210 = sbr.rel (%p208) target = $region28
      $region27: #{tpu_custom_call.1} parent=5 // pred_region
        // Predicated region
        $region29: #{tpu_custom_call.1} parent=27 // pred_check
          %p211 = pneg %p52
        $region30: #{tpu_custom_call.1} parent=27 // pred_check_branch
          %213 = sbr.rel (%p211) target = $region32
        $region31: #{tpu_custom_call.1} parent=27 // pred_region
          %s214 = sand.u32 %s42, 1
          %s215 = scalar_lea.sflag [#allocation4], %s214
          %s216 = sand.u32 %s42, 1
          %s217 = smul.addr %s216, 32
          %s218 = scalar_lea.vmem [#allocation3], %s217
          %s219 = smul.u32 4, %s26
          %s221 = ssub.s32 512, 512
          %222 = vsyncadd %s215, %s221
          %s223 = smul.addr %s25, 8
          %s224 = sadd.s32 %s219, %s223
          %s225 = smul.addr %s224, 128
          %s226 = scalar_lea.hbm %s0, %s225
          %s228 = sshll.u32 %s218, 4
          %s229 = int_to_ptr.vmem [resolvable:$true] %s228
          %231 = dma.hbm_to_vmem [thread:$0]  %s226, 512, %s229, %s215
        $region32: #{tpu_custom_call.1} parent=27 // pred_fallthru
          _
        // Predicated region
        $region33: #{tpu_custom_call.1} parent=27 // pred_check
          %p232 = pneg %p78
        $region34: #{tpu_custom_call.1} parent=27 // pred_check_branch
          %234 = sbr.rel (%p232) target = $region36
        $region35: #{tpu_custom_call.1} parent=27 // pred_region
          %s235 = sand.u32 %s18, 1
          %s236 = scalar_lea.sflag [#allocation7], %s235
          %s237 = sand.u32 %s68, 1
          %s238 = smul.addr %s237, 512
          %s239 = scalar_lea.vmem [#allocation6], %s238
          %s240 = smul.u32 64, %s26
          %s242 = ssub.s32 8192, 8192
          %243 = vsyncadd %s236, %s242
          %s244 = smul.addr %s240, 2
          %s245 = smul.addr %s244, 64
          %s246 = scalar_lea.hbm %s1, %s245
          %s247 = sshll.u32 %s239, 4
          %s248 = int_to_ptr.vmem [resolvable:$true] %s247
          %253 = dma.hbm_to_vmem [thread:$0]  %s246, 8192, %s248, %s236, 128, 128, 8
        $region36: #{tpu_custom_call.1} parent=27 // pred_fallthru
          _
      $region28: #{tpu_custom_call.1} parent=5 // pred_fallthru
        _
      %p254 = scmp.le.s32.totalorder 1, %s18
      %p255 = scmp.lt.s32.totalorder %s18, 3
      %p256 = pnand %p254, %p255
      %p257 = pneg %p256
      // Predicated region
      $region37: #{tpu_custom_call.1} parent=5 // pred_check
        _
      $region38: #{tpu_custom_call.1} parent=5 // pred_check_branch
        %259 = sbr.rel (%p256) target = $region40
      $region39: #{tpu_custom_call.1} parent=5 // pred_region
        %s260 = ssub.s32 %s18, 1
        %s261 = sand.u32 %s45, 1
        %s262 = scalar_lea.sflag [#allocation4], %s261
        %s263 = sand.u32 %s45, 1
        %s264 = smul.addr %s263, 32
        %s265 = scalar_lea.vmem [#allocation3], %s264
        // Predicated region
        $region41: #{tpu_custom_call.1} parent=39 // pred_check
          %p266 = pneg %p58
        $region42: #{tpu_custom_call.1} parent=39 // pred_check_branch
          %268 = sbr.rel (%p266) target = $region44
        $region43: #{tpu_custom_call.1} parent=39 // pred_region
          %269 = dma.done %s262, 512
        $region44: #{tpu_custom_call.1} parent=39 // pred_fallthru
          _
        %s270 = sand.u32 %s23, 1
        %s271 = scalar_lea.sflag [#allocation7], %s270
        %s272 = sand.u32 %s71, 1
        %s273 = smul.addr %s272, 512
        %s274 = scalar_lea.vmem [#allocation6], %s273
        // Predicated region
        $region45: #{tpu_custom_call.1} parent=39 // pred_check
          %p275 = pneg %p84
        $region46: #{tpu_custom_call.1} parent=39 // pred_check_branch
          %277 = sbr.rel (%p275) target = $region48
        $region47: #{tpu_custom_call.1} parent=39 // pred_region
          %278 = dma.done %s271, 8192
        $region48: #{tpu_custom_call.1} parent=39 // pred_fallthru
          _
        // Predicated region
        $region49: #{tpu_custom_call.1} parent=39 // pred_check
          %p279 = pneg %p126
        $region50: #{tpu_custom_call.1} parent=39 // pred_check_branch
          %281 = sbr.rel (%p279) target = $region52
        $region51: #{tpu_custom_call.1} parent=39 // pred_region
          %282 = dma.done [#allocation7], 2048
        $region52: #{tpu_custom_call.1} parent=39 // pred_fallthru
          _
        %s283 = sand.u32 %s45, 1
        %s284 = scalar_lea.sflag [#allocation4], %s283
        %s285 = sand.u32 %s45, 1
        %s286 = smul.addr %s285, 32
        %s287 = scalar_lea.vmem [#allocation3], %s286
        %p288 = pneg %p58
        %p289 = pneg %p55
        %s290 = sand.u32 %s23, 1
        %s291 = scalar_lea.sflag [#allocation7], %s290
        %s292 = sand.u32 %s71, 1
        %s293 = smul.addr %s292, 512
        %s294 = scalar_lea.vmem [#allocation6], %s293
        %p295 = pneg %p84
        %p296 = pneg %p81
        %p297 = pneg %p105
        %p298 = pneg %p102
        %p299 = pneg %p126
        %p300 = pneg %p123
        %p301 = pneg %p147
        %p302 = pneg %p144
        %p303 = pneg %p173
        %p304 = pneg %p170
        %s305 = smul.u32 4, %s28
        %s306 = smul.u32 64, %s28
        %p308 = scmp.eq.s32.totalorder %s28, 0
        // Predicated region
        $region53: #{tpu_custom_call.1} parent=39 // pred_check
          %p309 = pneg %p308
        $region54: #{tpu_custom_call.1} parent=39 // pred_check_branch
          %311 = sbr.rel (%p309) target = $region56
        $region55: #{tpu_custom_call.1} parent=39 // pred_region
          %312 = vst [vmem:[#allocation2] sm:$0xff] 0.0
          %313 = vst [vmem:[#allocation2 + $0x8] sm:$0xff] 0.0
        $region56: #{tpu_custom_call.1} parent=39 // pred_fallthru
          _
        %v314 = vld [vmem:[#allocation2] sm:$0xff]
        %v315 = vld [vmem:[#allocation2 + $0x8] sm:$0xff]
        %v316 = vld [vmem:[%s265] sm:$0xff]
        %v317 = vld [vmem:[%s265 + $0x8] sm:$0xff]
        %v318 = vld [vmem:[%s265 + $0x10] sm:$0xff]
        %v319 = vld [vmem:[%s265 + $0x18] sm:$0xff]
        %v320 = vpack.c.bf16 %v316, %v316
        %v321 = vpack.c.bf16 %v317, %v317
        %v322 = vpack.c.bf16 %v318, %v318
        %v323 = vpack.c.bf16 %v319, %v319
        %v324 = vld [vmem:[%s274] sm:$0xff]
        %v325 = vld [vmem:[%s274 + $0x8] sm:$0xff]
        %v326 = vld [vmem:[%s274 + $0x10] sm:$0xff]
        %v327 = vld [vmem:[%s274 + $0x18] sm:$0xff]
        %v328 = vld [vmem:[%s274 + $0x20] sm:$0xff]
        %v329 = vld [vmem:[%s274 + $0x28] sm:$0xff]
        %v330 = vld [vmem:[%s274 + $0x30] sm:$0xff]
        %v331 = vld [vmem:[%s274 + $0x38] sm:$0xff]
        %v332 = vld [vmem:[%s274 + $0x40] sm:$0xff]
        %v333 = vld [vmem:[%s274 + $0x48] sm:$0xff]
        %v334 = vld [vmem:[%s274 + $0x50] sm:$0xff]
        %v335 = vld [vmem:[%s274 + $0x58] sm:$0xff]
        %v336 = vld [vmem:[%s274 + $0x60] sm:$0xff]
        %v337 = vld [vmem:[%s274 + $0x68] sm:$0xff]
        %v338 = vld [vmem:[%s274 + $0x70] sm:$0xff]
        %v339 = vld [vmem:[%s274 + $0x78] sm:$0xff]
        %v340 = vld [vmem:[%s274 + $0x80] sm:$0xff]
        %v341 = vld [vmem:[%s274 + $0x88] sm:$0xff]
        %v342 = vld [vmem:[%s274 + $0x90] sm:$0xff]
        %v343 = vld [vmem:[%s274 + $0x98] sm:$0xff]
        %v344 = vld [vmem:[%s274 + $0xa0] sm:$0xff]
        %v345 = vld [vmem:[%s274 + $0xa8] sm:$0xff]
        %v346 = vld [vmem:[%s274 + $0xb0] sm:$0xff]
        %v347 = vld [vmem:[%s274 + $0xb8] sm:$0xff]
        %v348 = vld [vmem:[%s274 + $0xc0] sm:$0xff]
        %v349 = vld [vmem:[%s274 + $0xc8] sm:$0xff]
        %v350 = vld [vmem:[%s274 + $0xd0] sm:$0xff]
        %v351 = vld [vmem:[%s274 + $0xd8] sm:$0xff]
        %v352 = vld [vmem:[%s274 + $0xe0] sm:$0xff]
        %v353 = vld [vmem:[%s274 + $0xe8] sm:$0xff]
        %v354 = vld [vmem:[%s274 + $0xf0] sm:$0xff]
        %v355 = vld [vmem:[%s274 + $0xf8] sm:$0xff]
        %v356 = vld [vmem:[%s274 + $0x100] sm:$0xff]
        %v357 = vld [vmem:[%s274 + $0x108] sm:$0xff]
        %v358 = vld [vmem:[%s274 + $0x110] sm:$0xff]
        %v359 = vld [vmem:[%s274 + $0x118] sm:$0xff]
        %v360 = vld [vmem:[%s274 + $0x120] sm:$0xff]
        %v361 = vld [vmem:[%s274 + $0x128] sm:$0xff]
        %v362 = vld [vmem:[%s274 + $0x130] sm:$0xff]
        %v363 = vld [vmem:[%s274 + $0x138] sm:$0xff]
        %v364 = vld [vmem:[%s274 + $0x140] sm:$0xff]
        %v365 = vld [vmem:[%s274 + $0x148] sm:$0xff]
        %v366 = vld [vmem:[%s274 + $0x150] sm:$0xff]
        %v367 = vld [vmem:[%s274 + $0x158] sm:$0xff]
        %v368 = vld [vmem:[%s274 + $0x160] sm:$0xff]
        %v369 = vld [vmem:[%s274 + $0x168] sm:$0xff]
        %v370 = vld [vmem:[%s274 + $0x170] sm:$0xff]
        %v371 = vld [vmem:[%s274 + $0x178] sm:$0xff]
        %v372 = vld [vmem:[%s274 + $0x180] sm:$0xff]
        %v373 = vld [vmem:[%s274 + $0x188] sm:$0xff]
        %v374 = vld [vmem:[%s274 + $0x190] sm:$0xff]
        %v375 = vld [vmem:[%s274 + $0x198] sm:$0xff]
        %v376 = vld [vmem:[%s274 + $0x1a0] sm:$0xff]
        %v377 = vld [vmem:[%s274 + $0x1a8] sm:$0xff]
        %v378 = vld [vmem:[%s274 + $0x1b0] sm:$0xff]
        %v379 = vld [vmem:[%s274 + $0x1b8] sm:$0xff]
        %v380 = vld [vmem:[%s274 + $0x1c0] sm:$0xff]
        %v381 = vld [vmem:[%s274 + $0x1c8] sm:$0xff]
        %v382 = vld [vmem:[%s274 + $0x1d0] sm:$0xff]
        %v383 = vld [vmem:[%s274 + $0x1d8] sm:$0xff]
        %v384 = vld [vmem:[%s274 + $0x1e0] sm:$0xff]
        %v385 = vld [vmem:[%s274 + $0x1e8] sm:$0xff]
        %v386 = vld [vmem:[%s274 + $0x1f0] sm:$0xff]
        %v387 = vld [vmem:[%s274 + $0x1f8] sm:$0xff]
        %v452 = vunpack.c.l.b16 %v324
        %v453 = vunpack.c.h.b16 %v324
        %v454 = vunpack.c.l.b16 %v325
        %v455 = vunpack.c.h.b16 %v325
        %v456 = vunpack.c.l.b16 %v326
        %v457 = vunpack.c.h.b16 %v326
        %v458 = vunpack.c.l.b16 %v327
        %v459 = vunpack.c.h.b16 %v327
        %v460 = vunpack.c.l.b16 %v328
        %v461 = vunpack.c.h.b16 %v328
        %v462 = vunpack.c.l.b16 %v329
        %v463 = vunpack.c.h.b16 %v329
        %v464 = vunpack.c.l.b16 %v330
        %v465 = vunpack.c.h.b16 %v330
        %v466 = vunpack.c.l.b16 %v331
        %v467 = vunpack.c.h.b16 %v331
        %v468 = vunpack.c.l.b16 %v332
        %v469 = vunpack.c.h.b16 %v332
        %v470 = vunpack.c.l.b16 %v333
        %v471 = vunpack.c.h.b16 %v333
        %v472 = vunpack.c.l.b16 %v334
        %v473 = vunpack.c.h.b16 %v334
        %v474 = vunpack.c.l.b16 %v335
        %v475 = vunpack.c.h.b16 %v335
        %v476 = vunpack.c.l.b16 %v336
        %v477 = vunpack.c.h.b16 %v336
        %v478 = vunpack.c.l.b16 %v337
        %v479 = vunpack.c.h.b16 %v337
        %v480 = vunpack.c.l.b16 %v338
        %v481 = vunpack.c.h.b16 %v338
        %v482 = vunpack.c.l.b16 %v339
        %v483 = vunpack.c.h.b16 %v339
        %v484 = vunpack.c.l.b16 %v340
        %v485 = vunpack.c.h.b16 %v340
        %v486 = vunpack.c.l.b16 %v341
        %v487 = vunpack.c.h.b16 %v341
        %v488 = vunpack.c.l.b16 %v342
        %v489 = vunpack.c.h.b16 %v342
        %v490 = vunpack.c.l.b16 %v343
        %v491 = vunpack.c.h.b16 %v343
        %v492 = vunpack.c.l.b16 %v344
        %v493 = vunpack.c.h.b16 %v344
        %v494 = vunpack.c.l.b16 %v345
        %v495 = vunpack.c.h.b16 %v345
        %v496 = vunpack.c.l.b16 %v346
        %v497 = vunpack.c.h.b16 %v346
        %v498 = vunpack.c.l.b16 %v347
        %v499 = vunpack.c.h.b16 %v347
        %v500 = vunpack.c.l.b16 %v348
        %v501 = vunpack.c.h.b16 %v348
        %v502 = vunpack.c.l.b16 %v349
        %v503 = vunpack.c.h.b16 %v349
        %v504 = vunpack.c.l.b16 %v350
        %v505 = vunpack.c.h.b16 %v350
        %v506 = vunpack.c.l.b16 %v351
        %v507 = vunpack.c.h.b16 %v351
        %v508 = vunpack.c.l.b16 %v352
        %v509 = vunpack.c.h.b16 %v352
        %v510 = vunpack.c.l.b16 %v353
        %v511 = vunpack.c.h.b16 %v353
        %v512 = vunpack.c.l.b16 %v354
        %v513 = vunpack.c.h.b16 %v354
        %v514 = vunpack.c.l.b16 %v355
        %v515 = vunpack.c.h.b16 %v355
        %v516 = vunpack.c.l.b16 %v356
        %v517 = vunpack.c.h.b16 %v356
        %v518 = vunpack.c.l.b16 %v357
        %v519 = vunpack.c.h.b16 %v357
        %v520 = vunpack.c.l.b16 %v358
        %v521 = vunpack.c.h.b16 %v358
        %v522 = vunpack.c.l.b16 %v359
        %v523 = vunpack.c.h.b16 %v359
        %v524 = vunpack.c.l.b16 %v360
        %v525 = vunpack.c.h.b16 %v360
        %v526 = vunpack.c.l.b16 %v361
        %v527 = vunpack.c.h.b16 %v361
        %v528 = vunpack.c.l.b16 %v362
        %v529 = vunpack.c.h.b16 %v362
        %v530 = vunpack.c.l.b16 %v363
        %v531 = vunpack.c.h.b16 %v363
        %v532 = vunpack.c.l.b16 %v364
        %v533 = vunpack.c.h.b16 %v364
        %v534 = vunpack.c.l.b16 %v365
        %v535 = vunpack.c.h.b16 %v365
        %v536 = vunpack.c.l.b16 %v366
        %v537 = vunpack.c.h.b16 %v366
        %v538 = vunpack.c.l.b16 %v367
        %v539 = vunpack.c.h.b16 %v367
        %v540 = vunpack.c.l.b16 %v368
        %v541 = vunpack.c.h.b16 %v368
        %v542 = vunpack.c.l.b16 %v369
        %v543 = vunpack.c.h.b16 %v369
        %v544 = vunpack.c.l.b16 %v370
        %v545 = vunpack.c.h.b16 %v370
        %v546 = vunpack.c.l.b16 %v371
        %v547 = vunpack.c.h.b16 %v371
        %v548 = vunpack.c.l.b16 %v372
        %v549 = vunpack.c.h.b16 %v372
        %v550 = vunpack.c.l.b16 %v373
        %v551 = vunpack.c.h.b16 %v373
        %v552 = vunpack.c.l.b16 %v374
        %v553 = vunpack.c.h.b16 %v374
        %v554 = vunpack.c.l.b16 %v375
        %v555 = vunpack.c.h.b16 %v375
        %v556 = vunpack.c.l.b16 %v376
        %v557 = vunpack.c.h.b16 %v376
        %v558 = vunpack.c.l.b16 %v377
        %v559 = vunpack.c.h.b16 %v377
        %v560 = vunpack.c.l.b16 %v378
        %v561 = vunpack.c.h.b16 %v378
        %v562 = vunpack.c.l.b16 %v379
        %v563 = vunpack.c.h.b16 %v379
        %v564 = vunpack.c.l.b16 %v380
        %v565 = vunpack.c.h.b16 %v380
        %v566 = vunpack.c.l.b16 %v381
        %v567 = vunpack.c.h.b16 %v381
        %v568 = vunpack.c.l.b16 %v382
        %v569 = vunpack.c.h.b16 %v382
        %v570 = vunpack.c.l.b16 %v383
        %v571 = vunpack.c.h.b16 %v383
        %v572 = vunpack.c.l.b16 %v384
        %v573 = vunpack.c.h.b16 %v384
        %v574 = vunpack.c.l.b16 %v385
        %v575 = vunpack.c.h.b16 %v385
        %v576 = vunpack.c.l.b16 %v386
        %v577 = vunpack.c.h.b16 %v386
        %v578 = vunpack.c.l.b16 %v387
        %v579 = vunpack.c.h.b16 %v387
        %v580 = vpack.c.b16 %v454, %v452
        %v581 = vpack.c.b16 %v455, %v453
        %v582 = vpack.c.b16 %v458, %v456
        %v583 = vpack.c.b16 %v459, %v457
        %v584 = vpack.c.b16 %v462, %v460
        %v585 = vpack.c.b16 %v463, %v461
        %v586 = vpack.c.b16 %v466, %v464
        %v587 = vpack.c.b16 %v467, %v465
        %v588 = vpack.c.b16 %v470, %v468
        %v589 = vpack.c.b16 %v471, %v469
        %v590 = vpack.c.b16 %v474, %v472
        %v591 = vpack.c.b16 %v475, %v473
        %v592 = vpack.c.b16 %v478, %v476
        %v593 = vpack.c.b16 %v479, %v477
        %v594 = vpack.c.b16 %v482, %v480
        %v595 = vpack.c.b16 %v483, %v481
        %v596 = vpack.c.b16 %v486, %v484
        %v597 = vpack.c.b16 %v487, %v485
        %v598 = vpack.c.b16 %v490, %v488
        %v599 = vpack.c.b16 %v491, %v489
        %v600 = vpack.c.b16 %v494, %v492
        %v601 = vpack.c.b16 %v495, %v493
        %v602 = vpack.c.b16 %v498, %v496
        %v603 = vpack.c.b16 %v499, %v497
        %v604 = vpack.c.b16 %v502, %v500
        %v605 = vpack.c.b16 %v503, %v501
        %v606 = vpack.c.b16 %v506, %v504
        %v607 = vpack.c.b16 %v507, %v505
        %v608 = vpack.c.b16 %v510, %v508
        %v609 = vpack.c.b16 %v511, %v509
        %v610 = vpack.c.b16 %v514, %v512
        %v611 = vpack.c.b16 %v515, %v513
        %v612 = vpack.c.b16 %v518, %v516
        %v613 = vpack.c.b16 %v519, %v517
        %v614 = vpack.c.b16 %v522, %v520
        %v615 = vpack.c.b16 %v523, %v521
        %v616 = vpack.c.b16 %v526, %v524
        %v617 = vpack.c.b16 %v527, %v525
        %v618 = vpack.c.b16 %v530, %v528
        %v619 = vpack.c.b16 %v531, %v529
        %v620 = vpack.c.b16 %v534, %v532
        %v621 = vpack.c.b16 %v535, %v533
        %v622 = vpack.c.b16 %v538, %v536
        %v623 = vpack.c.b16 %v539, %v537
        %v624 = vpack.c.b16 %v542, %v540
        %v625 = vpack.c.b16 %v543, %v541
        %v626 = vpack.c.b16 %v546, %v544
        %v627 = vpack.c.b16 %v547, %v545
        %v628 = vpack.c.b16 %v550, %v548
        %v629 = vpack.c.b16 %v551, %v549
        %v630 = vpack.c.b16 %v554, %v552
        %v631 = vpack.c.b16 %v555, %v553
        %v632 = vpack.c.b16 %v558, %v556
        %v633 = vpack.c.b16 %v559, %v557
        %v634 = vpack.c.b16 %v562, %v560
        %v635 = vpack.c.b16 %v563, %v561
        %v636 = vpack.c.b16 %v566, %v564
        %v637 = vpack.c.b16 %v567, %v565
        %v638 = vpack.c.b16 %v570, %v568
        %v639 = vpack.c.b16 %v571, %v569
        %v640 = vpack.c.b16 %v574, %v572
        %v641 = vpack.c.b16 %v575, %v573
        %v642 = vpack.c.b16 %v578, %v576
        %v643 = vpack.c.b16 %v579, %v577
        %708 = vmatprep.subr.bf16.mxu0 %v595
        %709 = vmatpush1.bf16.msra.mxu0 %v594
        %710 = vmatprep.subr.bf16.mxu0 %v593
        %711 = vmatpush1.bf16.msra.mxu0 %v592
        %712 = vmatprep.subr.bf16.mxu0 %v591
        %713 = vmatpush1.bf16.msra.mxu0 %v590
        %714 = vmatprep.subr.bf16.mxu0 %v589
        %715 = vmatpush1.bf16.msra.mxu0 %v588
        %716 = vmatprep.subr.bf16.mxu0 %v587
        %717 = vmatpush1.bf16.msra.mxu0 %v586
        %718 = vmatprep.subr.bf16.mxu0 %v585
        %719 = vmatpush1.bf16.msra.mxu0 %v584
        %720 = vmatprep.subr.bf16.mxu0 %v583
        %721 = vmatpush1.bf16.msra.mxu0 %v582
        %722 = vmatprep.subr.bf16.mxu0 %v581
        %723 = vmatpush1.bf16.msra.mxu0 %v580
        %724 = vmatprep.subr.bf16.mxu0 %v611
        %725 = vmatpush2.bf16.msra.mxu0 %v610
        %726 = vmatprep.subr.bf16.mxu0 %v609
        %727 = vmatpush2.bf16.msra.mxu0 %v608
        %728 = vmatprep.subr.bf16.mxu0 %v607
        %729 = vmatpush2.bf16.msra.mxu0 %v606
        %730 = vmatprep.subr.bf16.mxu0 %v605
        %731 = vmatpush2.bf16.msra.mxu0 %v604
        %732 = vmatprep.subr.bf16.mxu0 %v603
        %733 = vmatpush2.bf16.msra.mxu0 %v602
        %734 = vmatprep.subr.bf16.mxu0 %v601
        %735 = vmatpush2.bf16.msra.mxu0 %v600
        %736 = vmatprep.subr.bf16.mxu0 %v599
        %737 = vmatpush2.bf16.msra.mxu0 %v598
        %738 = vmatprep.subr.bf16.mxu0 %v597
        %739 = vmatpush2.bf16.msra.mxu0 %v596
        %740 = vmatprep.mubr.bf16.mxu0 %v321
        %741 = vmatmul.mubr.bf16.gmra.mxu0 %v320
        %v742 = vpop.f32.mrf.mxu0
        %v743 = vadd.f32 0.0, %v742
        %v744 = vpop.f32.mrf.mxu0
        %v745 = vadd.f32 0.0, %v744
        %v746 = vpop.f32.mrf.mxu0
        %v747 = vpop.f32.mrf.mxu0
        %748 = vdwg.mxu0
        %749 = vmatprep.subr.bf16.mxu0 %v627
        %750 = vmatpush1.bf16.msra.mxu0 %v626
        %751 = vmatprep.subr.bf16.mxu0 %v625
        %752 = vmatpush1.bf16.msra.mxu0 %v624
        %753 = vmatprep.subr.bf16.mxu0 %v623
        %754 = vmatpush1.bf16.msra.mxu0 %v622
        %755 = vmatprep.subr.bf16.mxu0 %v621
        %756 = vmatpush1.bf16.msra.mxu0 %v620
        %757 = vmatprep.subr.bf16.mxu0 %v619
        %758 = vmatpush1.bf16.msra.mxu0 %v618
        %759 = vmatprep.subr.bf16.mxu0 %v617
        %760 = vmatpush1.bf16.msra.mxu0 %v616
        %761 = vmatprep.subr.bf16.mxu0 %v615
        %762 = vmatpush1.bf16.msra.mxu0 %v614
        %763 = vmatprep.subr.bf16.mxu0 %v613
        %764 = vmatpush1.bf16.msra.mxu0 %v612
        %765 = vmatprep.subr.bf16.mxu0 %v643
        %766 = vmatpush2.bf16.msra.mxu0 %v642
        %767 = vmatprep.subr.bf16.mxu0 %v641
        %768 = vmatpush2.bf16.msra.mxu0 %v640
        %769 = vmatprep.subr.bf16.mxu0 %v639
        %770 = vmatpush2.bf16.msra.mxu0 %v638
        %771 = vmatprep.subr.bf16.mxu0 %v637
        %772 = vmatpush2.bf16.msra.mxu0 %v636
        %773 = vmatprep.subr.bf16.mxu0 %v635
        %774 = vmatpush2.bf16.msra.mxu0 %v634
        %775 = vmatprep.subr.bf16.mxu0 %v633
        %776 = vmatpush2.bf16.msra.mxu0 %v632
        %777 = vmatprep.subr.bf16.mxu0 %v631
        %778 = vmatpush2.bf16.msra.mxu0 %v630
        %779 = vmatprep.subr.bf16.mxu0 %v629
        %780 = vmatpush2.bf16.msra.mxu0 %v628
        %781 = vmatprep.mubr.bf16.mxu0 %v323
        %782 = vmatmul.mubr.bf16.gmra.mxu0 %v322
        %v783 = vpop.f32.mrf.mxu0
        %v784 = vadd.f32 %v743, %v783
        %v785 = vpop.f32.mrf.mxu0
        %v786 = vadd.f32 %v745, %v785
        %v787 = vpop.f32.mrf.mxu0
        %v788 = vpop.f32.mrf.mxu0
        %789 = vdwg.mxu0
        %v790 = vadd.f32 %v314, %v784
        %v791 = vadd.f32 %v315, %v786
        %792 = vst [vmem:[#allocation2] sm:$0xff] %v790
        %793 = vst [vmem:[#allocation2 + $0x8] sm:$0xff] %v791
        %p794 = scmp.eq.s32.totalorder %s28, 1
        // Predicated region
        $region57: #{tpu_custom_call.1} parent=39 // pred_check
          %p795 = pneg %p794
        $region58: #{tpu_custom_call.1} parent=39 // pred_check_branch
          %797 = sbr.rel (%p795) target = $region60
        $region59: #{tpu_custom_call.1} parent=39 // pred_region
          %v798 = vld [vmem:[#allocation2] sm:$0xff]
          %v799 = vld [vmem:[#allocation2 + $0x8] sm:$0xff]
          %v800 = vld [vmem:[%s2] sm:$0x3]
          %v802 = vlaneseq
          %v803 = vshrl.u32 %v802, 7
          %v804 = vsub.s32 0, %v803
          %v805 = vrot.slane %v800, %v804
          %v806 = vlaneseq
          %v807 = vshrl.u32 %v806, 7
          %v808 = vsub.s32 1, %v807
          %v809 = vrot.slane %v800, %v808
          %v812 = vadd.f32 %v798, %v805
          %v813 = vadd.f32 %v799, %v809
          %v814 = vmax.f32 %v812, 0.0
          %v815 = vmax.f32 %v813, 0.0
          %v816 = vpack.c.bf16 %v814, %v814
          %v817 = vpack.c.bf16 %v815, %v815
          %v818 = vld [vmem:[#allocation8] sm:$0xf]
          %v819 = vld [vmem:[#allocation8 + $0x4] sm:$0xf]
          %v820 = vld [vmem:[#allocation8 + $0x8] sm:$0xf]
          %v821 = vld [vmem:[#allocation8 + $0xc] sm:$0xf]
          %v822 = vld [vmem:[#allocation8 + $0x10] sm:$0xf]
          %v823 = vld [vmem:[#allocation8 + $0x14] sm:$0xf]
          %v824 = vld [vmem:[#allocation8 + $0x18] sm:$0xf]
          %v825 = vld [vmem:[#allocation8 + $0x1c] sm:$0xf]
          %v826 = vld [vmem:[#allocation8 + $0x20] sm:$0xf]
          %v827 = vld [vmem:[#allocation8 + $0x24] sm:$0xf]
          %v828 = vld [vmem:[#allocation8 + $0x28] sm:$0xf]
          %v829 = vld [vmem:[#allocation8 + $0x2c] sm:$0xf]
          %v830 = vld [vmem:[#allocation8 + $0x30] sm:$0xf]
          %v831 = vld [vmem:[#allocation8 + $0x34] sm:$0xf]
          %v832 = vld [vmem:[#allocation8 + $0x38] sm:$0xf]
          %v833 = vld [vmem:[#allocation8 + $0x3c] sm:$0xf]
          %v834 = vld [vmem:[#allocation8 + $0x40] sm:$0xf]
          %v835 = vld [vmem:[#allocation8 + $0x44] sm:$0xf]
          %v836 = vld [vmem:[#allocation8 + $0x48] sm:$0xf]
          %v837 = vld [vmem:[#allocation8 + $0x4c] sm:$0xf]
          %v838 = vld [vmem:[#allocation8 + $0x50] sm:$0xf]
          %v839 = vld [vmem:[#allocation8 + $0x54] sm:$0xf]
          %v840 = vld [vmem:[#allocation8 + $0x58] sm:$0xf]
          %v841 = vld [vmem:[#allocation8 + $0x5c] sm:$0xf]
          %v842 = vld [vmem:[#allocation8 + $0x60] sm:$0xf]
          %v843 = vld [vmem:[#allocation8 + $0x64] sm:$0xf]
          %v844 = vld [vmem:[#allocation8 + $0x68] sm:$0xf]
          %v845 = vld [vmem:[#allocation8 + $0x6c] sm:$0xf]
          %v846 = vld [vmem:[#allocation8 + $0x70] sm:$0xf]
          %v847 = vld [vmem:[#allocation8 + $0x74] sm:$0xf]
          %v848 = vld [vmem:[#allocation8 + $0x78] sm:$0xf]
          %v849 = vld [vmem:[#allocation8 + $0x7c] sm:$0xf]
          %v850 = vld [vmem:[%s4] sm:$0x1]
          %v852 = vlaneseq
          %v853 = vshrl.u32 %v852, 7
          %v854 = vsub.s32 0, %v853
          %v855 = vrot.slane %v850, %v854
          %v889 = vunpack.c.l.b16 %v818
          %v890 = vunpack.c.l.b16 %v819
          %v891 = vunpack.c.l.b16 %v820
          %v892 = vunpack.c.l.b16 %v821
          %v893 = vunpack.c.l.b16 %v822
          %v894 = vunpack.c.l.b16 %v823
          %v895 = vunpack.c.l.b16 %v824
          %v896 = vunpack.c.l.b16 %v825
          %v897 = vunpack.c.l.b16 %v826
          %v898 = vunpack.c.l.b16 %v827
          %v899 = vunpack.c.l.b16 %v828
          %v900 = vunpack.c.l.b16 %v829
          %v901 = vunpack.c.l.b16 %v830
          %v902 = vunpack.c.l.b16 %v831
          %v903 = vunpack.c.l.b16 %v832
          %v904 = vunpack.c.l.b16 %v833
          %v905 = vunpack.c.l.b16 %v834
          %v906 = vunpack.c.l.b16 %v835
          %v907 = vunpack.c.l.b16 %v836
          %v908 = vunpack.c.l.b16 %v837
          %v909 = vunpack.c.l.b16 %v838
          %v910 = vunpack.c.l.b16 %v839
          %v911 = vunpack.c.l.b16 %v840
          %v912 = vunpack.c.l.b16 %v841
          %v913 = vunpack.c.l.b16 %v842
          %v914 = vunpack.c.l.b16 %v843
          %v915 = vunpack.c.l.b16 %v844
          %v916 = vunpack.c.l.b16 %v845
          %v917 = vunpack.c.l.b16 %v846
          %v918 = vunpack.c.l.b16 %v847
          %v919 = vunpack.c.l.b16 %v848
          %v920 = vunpack.c.l.b16 %v849
          %v921 = vpack.c.b16 %v890, %v889
          %v922 = vpack.c.b16 %v892, %v891
          %v923 = vpack.c.b16 %v894, %v893
          %v924 = vpack.c.b16 %v896, %v895
          %v925 = vpack.c.b16 %v898, %v897
          %v926 = vpack.c.b16 %v900, %v899
          %v927 = vpack.c.b16 %v902, %v901
          %v928 = vpack.c.b16 %v904, %v903
          %v929 = vpack.c.b16 %v906, %v905
          %v930 = vpack.c.b16 %v908, %v907
          %v931 = vpack.c.b16 %v910, %v909
          %v932 = vpack.c.b16 %v912, %v911
          %v933 = vpack.c.b16 %v914, %v913
          %v934 = vpack.c.b16 %v916, %v915
          %v935 = vpack.c.b16 %v918, %v917
          %v936 = vpack.c.b16 %v920, %v919
          %953 = vmatprep.subr.bf16.mxu0 0
          %954 = vmatpush1.bf16.msra.mxu0 %v928
          %955 = vmatprep.subr.bf16.mxu0 0
          %956 = vmatpush1.bf16.msra.mxu0 %v927
          %957 = vmatprep.subr.bf16.mxu0 0
          %958 = vmatpush1.bf16.msra.mxu0 %v926
          %959 = vmatprep.subr.bf16.mxu0 0
          %960 = vmatpush1.bf16.msra.mxu0 %v925
          %961 = vmatprep.subr.bf16.mxu0 0
          %962 = vmatpush1.bf16.msra.mxu0 %v924
          %963 = vmatprep.subr.bf16.mxu0 0
          %964 = vmatpush1.bf16.msra.mxu0 %v923
          %965 = vmatprep.subr.bf16.mxu0 0
          %966 = vmatpush1.bf16.msra.mxu0 %v922
          %967 = vmatprep.subr.bf16.mxu0 0
          %968 = vmatpush1.bf16.msra.mxu0 %v921
          %969 = vmatprep.subr.bf16.mxu0 0
          %970 = vmatpush2.bf16.msra.mxu0 %v936
          %971 = vmatprep.subr.bf16.mxu0 0
          %972 = vmatpush2.bf16.msra.mxu0 %v935
          %973 = vmatprep.subr.bf16.mxu0 0
          %974 = vmatpush2.bf16.msra.mxu0 %v934
          %975 = vmatprep.subr.bf16.mxu0 0
          %976 = vmatpush2.bf16.msra.mxu0 %v933
          %977 = vmatprep.subr.bf16.mxu0 0
          %978 = vmatpush2.bf16.msra.mxu0 %v932
          %979 = vmatprep.subr.bf16.mxu0 0
          %980 = vmatpush2.bf16.msra.mxu0 %v931
          %981 = vmatprep.subr.bf16.mxu0 0
          %982 = vmatpush2.bf16.msra.mxu0 %v930
          %983 = vmatprep.subr.bf16.mxu0 0
          %984 = vmatpush2.bf16.msra.mxu0 %v929
          %985 = vmatprep.mubr.bf16.mxu0 %v817
          %986 = vmatmul.mubr.bf16.gmra.mxu0 %v816
          %v987 = vpop.f32.mrf.mxu0
          %v988 = vadd.f32 %v855, %v987
          %v989 = vpop.f32.mrf.mxu0
          %v990 = vpop.f32.mrf.mxu0
          %v991 = vpop.f32.mrf.mxu0
          %992 = vdwg.mxu0
          %v993 = vmax.f32 %v988, 0.0
          %994 = vst [vmem:[#allocation9] sm:$0xff] %v993
        $region60: #{tpu_custom_call.1} parent=39 // pred_fallthru
          _
        // Predicated region
        $region61: #{tpu_custom_call.1} parent=39 // pred_check
          %p995 = pneg %p170
        $region62: #{tpu_custom_call.1} parent=39 // pred_check_branch
          %997 = sbr.rel (%p995) target = $region64
        $region63: #{tpu_custom_call.1} parent=39 // pred_region
          %s999 = ssub.s32 128, 128
          %1000 = vsyncadd [#allocation5], %s999
          %s1001 = smul.addr %s27, 128
          %s1002 = scalar_lea.hbm %s5, %s1001
          %s1004 = sshll.u32 [#allocation9], 4
          %s1005 = int_to_ptr.vmem [resolvable:$true] %s1004
          %1007 = dma.vmem_to_hbm [thread:$0]  %s1005, 128, %s1002, [#allocation5]
        $region64: #{tpu_custom_call.1} parent=39 // pred_fallthru
          _
        // Predicated region
        $region65: #{tpu_custom_call.1} parent=39 // pred_check
          %p1008 = pneg %p170
        $region66: #{tpu_custom_call.1} parent=39 // pred_check_branch
          %1010 = sbr.rel (%p1008) target = $region68
        $region67: #{tpu_custom_call.1} parent=39 // pred_region
          %1011 = dma.done [#allocation5], 128
        $region68: #{tpu_custom_call.1} parent=39 // pred_fallthru
          _
      $region40: #{tpu_custom_call.1} parent=5 // pred_fallthru
        _
      %p1012 = scmp.le.s32.totalorder 2, %s18
      // Predicated region
      $region69: #{tpu_custom_call.1} parent=5 // pred_check
        %p1013 = pneg %p1012
      $region70: #{tpu_custom_call.1} parent=5 // pred_check_branch
        %1015 = sbr.rel (%p1013) target = $region72
      $region71: #{tpu_custom_call.1} parent=5 // pred_region
        %s1016 = ssub.s32 %s18, 2
      $region72: #{tpu_custom_call.1} parent=5 // pred_fallthru
        _
    $region6: #{tpu_custom_call.1} parent=1 // loop_footer
      %s22 = sadd.s32 1, %s18
    $region7: #{tpu_custom_call.1} parent=1 // loop_footer_branch
      %17 = sbr.rel target = $region3
    $region8: #{tpu_custom_call.1} parent=1 // loop_exit
      _
    %1017 = vsyncpa [#allocation4], 1
    %s1018 = scalar_lea.sflag [#allocation4], 1
    %1019 = vsyncpa %s1018, 1
    %1020 = vsyncpa [#allocation7], 1
    %s1021 = scalar_lea.sflag [#allocation7], 1
    %1022 = vsyncpa %s1021, 1
    %1023 = vsyncpa [#allocation5], 1
    %s1024 = scalar_lea.sflag [#allocation5], 1
    %1025 = vsyncpa %s1024, 1

</llo_original>
